<compile_context>
chip_gen: v7x
topology: tpu7x:2x2x1
jax: 0.10.0
libtpu: 0.0.40
codegen_flags: <defaults>
</compile_context>

<pallas_src>
import functools

import numpy as np
import jax
import jax.numpy as jnp
from jax import lax
from jax.experimental import pallas as pl
from jax.experimental.pallas import tpu as pltpu


# --------------------------------------------------------------------------- #
# constant structure matrices (pure functions of the shapes, built with numpy)
# --------------------------------------------------------------------------- #
def _pool_structure(W, Wp, k):
    """(W, Wp) matrix S with S[i, wp] = 1/k over AvgPool2d's wp-th window."""
    S = np.zeros((W, Wp), np.float32)
    for wp in range(Wp):
        S[wp * k:(wp + 1) * k, wp] = 1.0 / k
    return S


def _tap_structure(W, Wp):
    """Three (Wp, W) 0/1 matrices folding the conv W-taps with nearest upsample."""
    up = (np.arange(W) * Wp) // W          # PyTorch 'nearest': floor(dst * in/out)
    mats = []
    for dw in range(3):
        T = np.zeros((Wp, W), np.float32)
        src = up + dw - 1                  # padding=1 -> source column up(w)+dw-1
        valid = (src >= 0) & (src < Wp)
        T[src[valid], np.arange(W)[valid]] = 1.0
        mats.append(T)
    return mats


def _build_weights(w_oihw, W, Wp, k, dtype):
    """P: (W*C, Wp*C) pooling matrix.  Q: (3, Wp*C, W*C) per-dh conv weights with
    the W-taps, channel mixing and nearest upsample folded in."""
    C = w_oihw.shape[1]
    P = jnp.kron(jnp.asarray(_pool_structure(W, Wp, k)),
                 jnp.eye(C, dtype=jnp.float32))
    taps = _tap_structure(W, Wp)
    w32 = w_oihw.astype(jnp.float32)
    Q = []
    for dh in range(3):
        q = jnp.zeros((Wp * C, W * C), jnp.float32)
        for dw in range(3):
            w_ci_co = jnp.transpose(w32[:, :, dh, dw])        # (Ci, Co)
            q = q + jnp.kron(jnp.asarray(taps[dw]), w_ci_co)
        Q.append(q)
    return P.astype(dtype), jnp.stack(Q).astype(dtype)


def _pick_n_tile(N, H, max_rows=512):
    """Largest batch tile that divides N, keeps M = n_tile*H modest, and leaves
    >= 2 grid steps so both TensorCores of a megacore get work."""
    cands = [d for d in range(1, N + 1)
             if N % d == 0 and d * H <= max_rows and (N // d >= 2 or N == 1)]
    return max(cands) if cands else 1


# --------------------------------------------------------------------------- #
# HVSP kernel
# --------------------------------------------------------------------------- #
def _make_hvsp_kernel(n_tile, H, W, C, Wp):
    WC, WpC = W * C, Wp * C

    def kernel(x_ref, p_ref, q_ref, o_ref, pad_ref):
        # x_ref  : (n_tile, H, W*C)      input slab (batch tile)
        # p_ref  : (W*C, Wp*C)           pooling matrix (constant over the grid)
        # q_ref  : (3, Wp*C, W*C)        per-dh conv weights (upsample folded in)
        # o_ref  : (n_tile, H, W*C)      output slab
        # pad_ref: (n_tile, H+2, Wp*C)   H-zero-padded pooled activations (VMEM)

        # Zero only the two H-halo rows each step (cheap; stays correct for any
        # megacore assignment of grid steps to cores).
        halo = jnp.zeros((n_tile, 1, WpC), pad_ref.dtype)
        pad_ref[:, 0:1, :] = halo
        pad_ref[:, H + 1:H + 2, :] = halo

        # ---- AvgPool2d over W: one lane-dense MXU op ----
        x2d = x_ref[...].reshape(n_tile * H, WC)
        pooled = jnp.dot(x2d, p_ref[...], preferred_element_type=jnp.float32)
        pad_ref[:, 1:H + 1, :] = pooled.reshape(n_tile, H, WpC).astype(pad_ref.dtype)

        # ---- Conv2d(C, C, 3, padding=1) + nearest upsample ----
        # Three H-shifted matmuls accumulated in f32; the three W-taps and the
        # column repeat live inside q_ref[dh], so this emits the final slab.
        acc = jnp.zeros((n_tile * H, WC), jnp.float32)
        for dh in range(3):                                   # static trip count 3
            patch = pad_ref[:, dh:dh + H, :].reshape(n_tile * H, WpC)
            acc = acc + jnp.dot(patch, q_ref[dh],
                                preferred_element_type=jnp.float32)

        # one full-slab (lane-dense) store
        o_ref[...] = acc.reshape(n_tile, H, WC).astype(o_ref.dtype)

    return kernel


def _hvsp_width_nhwc(x_nhwc, w_oihw, k):
    """HVSP with the pooled axis = axis 2 of a channels-last tensor."""
    N, H, W, C = x_nhwc.shape
    Wp = W // k
    if Wp < 1:
        raise ValueError("pool window larger than the pooled axis")
    dtype = x_nhwc.dtype

    n_tile = _pick_n_tile(N, H)
    P, Q = _build_weights(w_oihw, W, Wp, k, dtype)
    x_flat = x_nhwc.reshape(N, H, W * C)                      # free reshape

    out_flat = pl.pallas_call(
        _make_hvsp_kernel(n_tile, H, W, C, Wp),
        out_shape=jax.ShapeDtypeStruct((N, H, W * C), dtype),
        grid_spec=pltpu.PrefetchScalarGridSpec(
            num_scalar_prefetch=0,
            grid=(N // n_tile,),
            in_specs=[
                pl.BlockSpec((n_tile, H, W * C), lambda b: (b, 0, 0)),
                # Constant index maps: fetched once per core.  At large Wp*C,
                # single-buffer these (pl.Buffered(1) / one-shot DMA to scratch).
                pl.BlockSpec((W * C, Wp * C), lambda b: (0, 0)),
                pl.BlockSpec((3, Wp * C, W * C), lambda b: (0, 0, 0)),
            ],
            out_specs=pl.BlockSpec((n_tile, H, W * C), lambda b: (b, 0, 0)),
            scratch_shapes=[pltpu.VMEM((n_tile, H + 2, Wp * C), dtype)],
        ),
        compiler_params=pltpu.CompilerParams(
            dimension_semantics=("parallel",),
        ),
    )(x_flat, P, Q)
    return out_flat.reshape(N, H, W, C)


@functools.partial(jax.jit, static_argnames=("k_size", "types"))
def hvsp_pallas(x_nchw, w_oihw, k_size, types=False):
    """Matches HVSP.forward on an NCHW input (PyTorch interface parity)."""
    if types:
        # Fuse the H<->W swap into the (mandatory) NCHW -> channels-last permute:
        # exactly one permute each way, same as the types=False path.
        out = _hvsp_width_nhwc(jnp.transpose(x_nchw, (0, 3, 2, 1)),
                               jnp.transpose(w_oihw, (0, 1, 3, 2)), k_size)
        return jnp.transpose(out, (0, 3, 2, 1))
    out = _hvsp_width_nhwc(jnp.transpose(x_nchw, (0, 2, 3, 1)), w_oihw, k_size)
    return jnp.transpose(out, (0, 3, 1, 2))


@functools.partial(jax.jit, static_argnames=("k_size", "types"))
def hvsp_pallas_nhwc(x_nhwc, w_oihw, k_size, types=False):
    """Channels-last entry point: types=False pays zero layout transposes."""
    if types:
        out = _hvsp_width_nhwc(jnp.transpose(x_nhwc, (0, 2, 1, 3)),
                               jnp.transpose(w_oihw, (0, 1, 3, 2)), k_size)
        return jnp.transpose(out, (0, 2, 1, 3))
    return _hvsp_width_nhwc(x_nhwc, w_oihw, k_size)


# --------------------------------------------------------------------------- #
# final gate fusion kernel:  LeakyReLU_{0.2}( sigmoid(g) * x + x )
# --------------------------------------------------------------------------- #
def _gate_kernel(g_ref, x_ref, o_ref):
    g = g_ref[...].astype(jnp.float32)
    x = x_ref[...].astype(jnp.float32)
    sig = 1.0 / (1.0 + jnp.exp(-g))                           # EUP exp
    y = sig * x + x
    o_ref[...] = jnp.where(y >= 0, y, 0.2 * y).astype(o_ref.dtype)


def gate_pallas(g_nchw, x_nchw):
    N, C, H, W = x_nchw.shape
    g2 = g_nchw.reshape(N, C, H * W)                          # lane-dense last dim
    x2 = x_nchw.reshape(N, C, H * W)
    out = pl.pallas_call(
        _gate_kernel,
        out_shape=jax.ShapeDtypeStruct((N, C, H * W), x_nchw.dtype),
        grid_spec=pltpu.PrefetchScalarGridSpec(
            num_scalar_prefetch=0,
            grid=(N,),
            in_specs=[pl.BlockSpec((1, C, H * W), lambda b: (b, 0, 0)),
                      pl.BlockSpec((1, C, H * W), lambda b: (b, 0, 0))],
            out_specs=pl.BlockSpec((1, C, H * W), lambda b: (b, 0, 0)),
        ),
        compiler_params=pltpu.CompilerParams(dimension_semantics=("parallel",)),
    )(g2, x2)
    return out.reshape(N, C, H, W)


# --------------------------------------------------------------------------- #
# pure-JAX reference for HVSP (mirrors AvgPool2d / Conv2d / F.interpolate nearest)
# --------------------------------------------------------------------------- #
def hvsp_ref(x_nchw, w_oihw, k, types=False):
    N, C, H, W = x_nchw.shape
    if types:
        Hp = H // k
        pooled = x_nchw[:, :, :Hp * k, :].reshape(N, C, Hp, k, W).mean(axis=3)
    else:
        Wp = W // k
        pooled = x_nchw[:, :, :, :Wp * k].reshape(N, C, H, Wp, k).mean(axis=4)
    conv = lax.conv_general_dilated(
        pooled, w_oihw, window_strides=(1, 1), padding=((1, 1), (1, 1)),
        dimension_numbers=("NCHW", "OIHW", "NCHW"))
    if types:
        idx = (jnp.arange(H) * (H // k)) // H
        return jnp.take(conv, idx, axis=2)
    idx = (jnp.arange(W) * (W // k)) // W
    return jnp.take(conv, idx, axis=3)


# --------------------------------------------------------------------------- #
# full DPA_v3 forward (XLA convs everywhere Pallas isn't used)
# --------------------------------------------------------------------------- #
def _leaky(x, slope=0.2):
    return jnp.where(x >= 0, x, slope * x)


def _conv2d_nchw(x, w, padding, bias=None):
    out = lax.conv_general_dilated(
        x, w, window_strides=(1, 1), padding=padding,
        dimension_numbers=("NCHW", "OIHW", "NCHW"))
    if bias is not None:
        out = out + bias.reshape(1, -1, 1, 1)
    return out


def _dsp_branch(x, conv1_w, k, anti):
    """DSP: fixed diagonal/anti-diagonal pooling conv (same kernel for every
    (out,in) pair), then a (3,1) learned conv."""
    C = x.shape[1]
    K = jnp.eye(k, dtype=x.dtype) / k
    if anti:
        K = jnp.flip(K, axis=1)
    kern = jnp.broadcast_to(K, (C, C, k, k))
    pooled = lax.conv_general_dilated(
        x, kern, (1, 1), ((k // 2, k // 2), (k // 2, k // 2)),
        dimension_numbers=("NCHW", "OIHW", "NCHW"))
    return _conv2d_nchw(pooled, conv1_w, ((1, 1), (0, 0)))


def init_dpa_params(key, inplanes, dtype=jnp.float32):
    mid = inplanes // 4
    ks = jax.random.split(key, 10)
    def w(k, shape): return 0.1 * jax.random.normal(k, shape, dtype)
    return dict(
        in_conv_w=w(ks[0], (mid, inplanes, 3, 3)), in_conv_b=w(ks[1], (mid,)),
        sp_hor_w=w(ks[2], (mid, mid, 3, 1)), sp_ver_w=w(ks[3], (mid, mid, 1, 3)),
        sp_fusion_w=w(ks[4], (mid, mid, 3, 3)),
        hor_w=w(ks[5], (mid, mid, 3, 3)), ver_w=w(ks[6], (mid, mid, 3, 3)),
        dsp_w=w(ks[7], (mid, mid, 3, 1)), adsp_w=w(ks[8], (mid, mid, 3, 1)),
        out_w=w(ks[9], (inplanes, 5 * mid, 3, 3)),
    )


@functools.partial(jax.jit, static_argnames=("k_size", "use_pallas"))
def dpa_v3_forward(params, x, k_size=3, use_pallas=True):
    """DPA_v3.forward.  use_pallas selects Pallas kernels for the HVSP branches
    and the final sigmoid-gate fusion; the pure-JAX path is the reference."""
    feat = _leaky(_conv2d_nchw(x, params["in_conv_w"], ((1, 1), (1, 1)),
                               bias=params["in_conv_b"]))

    # --- SP branches (strip pooling) ---
    hor_pool = feat.mean(axis=3, keepdims=True)               # (N,C,H,1)
    ver_pool = feat.mean(axis=2, keepdims=True)               # (N,C,1,W)
    sp_h = jnp.broadcast_to(
        _conv2d_nchw(hor_pool, params["sp_hor_w"], ((1, 1), (0, 0))), feat.shape)
    sp_v = jnp.broadcast_to(
        _conv2d_nchw(ver_pool, params["sp_ver_w"], ((0, 0), (1, 1))), feat.shape)
    sp = _conv2d_nchw(sp_h * sp_v, params["sp_fusion_w"], ((1, 1), (1, 1)))

    # --- HVSP branches (Pallas kernel) ---
    if use_pallas:
        x_h = hvsp_pallas(feat, params["hor_w"], k_size, types=True)
        x_w = hvsp_pallas(feat, params["ver_w"], k_size, types=False)
    else:
        x_h = hvsp_ref(feat, params["hor_w"], k_size, types=True)
        x_w = hvsp_ref(feat, params["ver_w"], k_size, types=False)

    # --- DSP branches (diagonal / anti-diagonal pooling) ---
    x_d = _dsp_branch(feat, params["dsp_w"], k_size, anti=False)
    x_ad = _dsp_branch(feat, params["adsp_w"], k_size, anti=True)

    dpa = jnp.concatenate([sp, x_h, x_w, x_d, x_ad], axis=1)
    dpa = _conv2d_nchw(dpa, params["out_w"], ((1, 1), (1, 1)))

    # --- final gate: LeakyReLU(sigmoid(dpa) * x + x) ---
    if use_pallas:
        return gate_pallas(dpa, x)
    y = jax.nn.sigmoid(dpa) * x + x
    return _leaky(y)


# --------------------------------------------------------------------------- #
# tests
# --------------------------------------------------------------------------- #
if __name__ == "__main__":
    key = jax.random.PRNGKey(0)
    kx, kw, kp = jax.random.split(key, 3)
    C = 4
    w = 0.1 * jax.random.normal(kw, (C, C, 3, 3), dtype=jnp.float32)

    failures = []

    def _check(name, out, ref, tol, want_dtype):
        out = jax.block_until_ready(out)
        if out.shape != ref.shape:
            failures.append(f"{name}: shape {out.shape} vs {ref.shape}")
            return
        if out.dtype != want_dtype:
            failures.append(f"{name}: dtype {out.dtype} vs {want_dtype}")
            return
        err = float(jnp.max(jnp.abs(out.astype(jnp.float32) - ref.astype(jnp.float32))))
        if err > tol:
            failures.append(f"{name}: max abs err {err:.3e} > {tol}")

    # --- HVSP kernel unit tests ---
    # cfg 0: divisible pooling (k=4), grid of 2 single-batch tiles
    # cfg 1: DPA_v3's k_size=3 (16 not divisible by 3) with n_tile=2 batch stacking
    for cfg_id, (N, H, W, k) in enumerate([(2, 16, 16, 4), (4, 16, 16, 3)]):
        x = jax.random.normal(jax.random.fold_in(kx, cfg_id),
                              (N, C, H, W), dtype=jnp.float32)
        for types in (False, True):
            name = f"hvsp f32 N={N} k={k} types={types}"
            _check(name, hvsp_pallas(x, w, k, types=types),
                   hvsp_ref(x, w, k, types=types), 1e-4, jnp.float32)

    # NHWC-native entry point (no layout transposes at the op boundary)
    x = jax.random.normal(jax.random.fold_in(kx, 7), (2, C, 16, 16), jnp.float32)
    out_nhwc = hvsp_pallas_nhwc(jnp.transpose(x, (0, 2, 3, 1)), w, 3)
    _check("hvsp nhwc entry", jnp.transpose(out_nhwc, (0, 3, 1, 2)),
           hvsp_ref(x, w, 3), 1e-4, jnp.float32)

    # bf16 path: input dtype preserved; matmuls run in bf16 with f32 accumulation
    out_bf16 = hvsp_pallas(x.astype(jnp.bfloat16), w.astype(jnp.bfloat16), 3)
    _check("hvsp bf16", out_bf16, hvsp_ref(x, w, 3), 1e-1, jnp.bfloat16)

    # --- full DPA_v3 forward: Pallas (HVSP + gate) vs pure-JAX reference ---
    inplanes = 16                      # midplanes = 4
    params = init_dpa_params(kp, inplanes)
    x_in = jax.random.normal(jax.random.fold_in(kx, 99),
                             (2, inplanes, 16, 16), dtype=jnp.float32)
    out_p = dpa_v3_forward(params, x_in, k_size=3, use_pallas=True)
    out_r = dpa_v3_forward(params, x_in, k_size=3, use_pallas=False)
    _check("dpa_v3 forward", out_p, out_r, 2e-4, jnp.float32)

    if failures:
        raise SystemExit("Pallas kernel mismatch: " + "; ".join(failures))
    print("KERNEL_OK")
</pallas_src>

<mosaic_0001>
module attributes {stable_mosaic.version = 11 : i64} {
  func.func @kernel(%arg0: i32, %arg1: memref<1x16x64xf32, #tpu.memory_space<vmem>>, %arg2: memref<64x16xf32, #tpu.memory_space<vmem>>, %arg3: memref<3x16x64xf32, #tpu.memory_space<vmem>>, %arg4: memref<1x16x64xf32, #tpu.memory_space<vmem>>, %arg5: memref<1x18x16xf32, #tpu.memory_space<vmem>>) attributes {dimension_semantics = [#tpu.dimension_semantics<parallel>], iteration_bounds = array<i64: 2>, scalar_prefetch = 0 : i64, scratch_operands = 1 : i64, tpu.core_type = #tpu.core_type<tc>, window_params = [{transform_indices = @transform_0, window_bounds = array<i64: 1, 16, 64>}, {pipeline_mode = #tpu.pipeline_mode<synchronous>, transform_indices = @transform_1, window_bounds = array<i64: 64, 16>}, {pipeline_mode = #tpu.pipeline_mode<synchronous>, transform_indices = @transform_2, window_bounds = array<i64: 3, 16, 64>}, {transform_indices = @transform_3, window_bounds = array<i64: 1, 16, 64>}]} {
    %cst = arith.constant 0.000000e+00 : f32
    %0 = vector.broadcast %cst : f32 to vector<1x1x16xf32>
    %c0 = arith.constant 0 : index
    %c0_0 = arith.constant 0 : index
    %c0_1 = arith.constant 0 : index
    %1 = vector.load %arg5[%c0, %c0_0, %c0_1] : memref<1x18x16xf32, #tpu.memory_space<vmem>>, vector<1x1x16xf32>
    tpu.vector_store %arg5[%c0, %c0_0, %c0_1], %0 {strides = array<i32>} : memref<1x18x16xf32, #tpu.memory_space<vmem>>, vector<1x1x16xf32>,
    %c0_2 = arith.constant 0 : index
    %c17 = arith.constant 17 : index
    %c0_3 = arith.constant 0 : index
    %2 = vector.load %arg5[%c0_2, %c17, %c0_3] : memref<1x18x16xf32, #tpu.memory_space<vmem>>, vector<1x1x16xf32>
    tpu.vector_store %arg5[%c0_2, %c17, %c0_3], %0 {strides = array<i32>} : memref<1x18x16xf32, #tpu.memory_space<vmem>>, vector<1x1x16xf32>,
    %c0_4 = arith.constant 0 : index
    %c0_5 = arith.constant 0 : index
    %c0_6 = arith.constant 0 : index
    %3 = vector.load %arg1[%c0_4, %c0_5, %c0_6] : memref<1x16x64xf32, #tpu.memory_space<vmem>>, vector<1x16x64xf32>
    %4 = vector.shape_cast %3 : vector<1x16x64xf32> to vector<16x64xf32>
    %c0_7 = arith.constant 0 : index
    %c0_8 = arith.constant 0 : index
    %5 = vector.load %arg2[%c0_7, %c0_8] : memref<64x16xf32, #tpu.memory_space<vmem>>, vector<64x16xf32>
    %cst_9 = arith.constant dense<0.000000e+00> : vector<16x16xf32>
    %6 = tpu.matmul %4, %5, %cst_9 {dimension_numbers = #tpu.dot_dimension_numbers<[1], [0], [0], [1], [0, 0, 1, 1], [], []>} : vector<16x64xf32>, vector<64x16xf32>, vector<16x16xf32> -> vector<16x16xf32>
    %7 = vector.shape_cast %6 : vector<16x16xf32> to vector<1x16x16xf32>
    %c0_10 = arith.constant 0 : index
    %c1 = arith.constant 1 : index
    %c0_11 = arith.constant 0 : index
    %8 = vector.load %arg5[%c0_10, %c1, %c0_11] : memref<1x18x16xf32, #tpu.memory_space<vmem>>, vector<1x16x16xf32>
    tpu.vector_store %arg5[%c0_10, %c1, %c0_11], %7 {strides = array<i32>} : memref<1x18x16xf32, #tpu.memory_space<vmem>>, vector<1x16x16xf32>,
    %cst_12 = arith.constant 0.000000e+00 : f32
    %9 = vector.broadcast %cst_12 : f32 to vector<16x64xf32>
    %c0_13 = arith.constant 0 : index
    %c0_14 = arith.constant 0 : index
    %c0_15 = arith.constant 0 : index
    %10 = vector.load %arg5[%c0_13, %c0_14, %c0_15] : memref<1x18x16xf32, #tpu.memory_space<vmem>>, vector<1x16x16xf32>
    %11 = vector.shape_cast %10 : vector<1x16x16xf32> to vector<16x16xf32>
    %c0_16 = arith.constant 0 : index
    %c0_17 = arith.constant 0 : index
    %c0_18 = arith.constant 0 : index
    %12 = vector.load %arg3[%c0_16, %c0_17, %c0_18] : memref<3x16x64xf32, #tpu.memory_space<vmem>>, vector<1x16x64xf32>
    %13 = vector.shape_cast %12 : vector<1x16x64xf32> to vector<16x64xf32>
    %cst_19 = arith.constant dense<0.000000e+00> : vector<16x64xf32>
    %14 = tpu.matmul %11, %13, %cst_19 {dimension_numbers = #tpu.dot_dimension_numbers<[1], [0], [0], [1], [0, 0, 1, 1], [], []>} : vector<16x16xf32>, vector<16x64xf32>, vector<16x64xf32> -> vector<16x64xf32>
    %15 = arith.addf %9, %14 : vector<16x64xf32>
    %c0_20 = arith.constant 0 : index
    %c1_21 = arith.constant 1 : index
    %c0_22 = arith.constant 0 : index
    %16 = vector.load %arg5[%c0_20, %c1_21, %c0_22] : memref<1x18x16xf32, #tpu.memory_space<vmem>>, vector<1x16x16xf32>
    %17 = vector.shape_cast %16 : vector<1x16x16xf32> to vector<16x16xf32>
    %c1_23 = arith.constant 1 : index
    %c0_24 = arith.constant 0 : index
    %c0_25 = arith.constant 0 : index
    %18 = vector.load %arg3[%c1_23, %c0_24, %c0_25] : memref<3x16x64xf32, #tpu.memory_space<vmem>>, vector<1x16x64xf32>
    %19 = vector.shape_cast %18 : vector<1x16x64xf32> to vector<16x64xf32>
    %cst_26 = arith.constant dense<0.000000e+00> : vector<16x64xf32>
    %20 = tpu.matmul %17, %19, %cst_26 {dimension_numbers = #tpu.dot_dimension_numbers<[1], [0], [0], [1], [0, 0, 1, 1], [], []>} : vector<16x16xf32>, vector<16x64xf32>, vector<16x64xf32> -> vector<16x64xf32>
    %21 = arith.addf %15, %20 : vector<16x64xf32>
    %c0_27 = arith.constant 0 : index
    %c2 = arith.constant 2 : index
    %c0_28 = arith.constant 0 : index
    %22 = vector.load %arg5[%c0_27, %c2, %c0_28] : memref<1x18x16xf32, #tpu.memory_space<vmem>>, vector<1x16x16xf32>
    %23 = vector.shape_cast %22 : vector<1x16x16xf32> to vector<16x16xf32>
    %c2_29 = arith.constant 2 : index
    %c0_30 = arith.constant 0 : index
    %c0_31 = arith.constant 0 : index
    %24 = vector.load %arg3[%c2_29, %c0_30, %c0_31] : memref<3x16x64xf32, #tpu.memory_space<vmem>>, vector<1x16x64xf32>
    %25 = vector.shape_cast %24 : vector<1x16x64xf32> to vector<16x64xf32>
    %cst_32 = arith.constant dense<0.000000e+00> : vector<16x64xf32>
    %26 = tpu.matmul %23, %25, %cst_32 {dimension_numbers = #tpu.dot_dimension_numbers<[1], [0], [0], [1], [0, 0, 1, 1], [], []>} : vector<16x16xf32>, vector<16x64xf32>, vector<16x64xf32> -> vector<16x64xf32>
    %27 = arith.addf %21, %26 : vector<16x64xf32>
    %28 = vector.shape_cast %27 : vector<16x64xf32> to vector<1x16x64xf32>
    %c0_33 = arith.constant 0 : index
    %c0_34 = arith.constant 0 : index
    %c0_35 = arith.constant 0 : index
    %29 = vector.load %arg4[%c0_33, %c0_34, %c0_35] : memref<1x16x64xf32, #tpu.memory_space<vmem>>, vector<1x16x64xf32>
    tpu.vector_store %arg4[%c0_33, %c0_34, %c0_35], %28 {strides = array<i32>} : memref<1x16x64xf32, #tpu.memory_space<vmem>>, vector<1x16x64xf32>,
    return
  }
  func.func @transform_0(%arg0: i32) -> (i32, i32, i32) {
    %c0_i32 = arith.constant 0 : i32
    %c0_i32_0 = arith.constant 0 : i32
    %c0_i32_1 = arith.constant 0 : i32
    return %arg0, %c0_i32, %c0_i32_0 : i32, i32, i32
  }
  func.func @transform_1(%arg0: i32) -> (i32, i32) {
    %c0_i32 = arith.constant 0 : i32
    %c0_i32_0 = arith.constant 0 : i32
    %c0_i32_1 = arith.constant 0 : i32
    return %c0_i32, %c0_i32_0 : i32, i32
  }
  func.func @transform_2(%arg0: i32) -> (i32, i32, i32) {
    %c0_i32 = arith.constant 0 : i32
    %c0_i32_0 = arith.constant 0 : i32
    %c0_i32_1 = arith.constant 0 : i32
    %c0_i32_2 = arith.constant 0 : i32
    return %c0_i32, %c0_i32_0, %c0_i32_1 : i32, i32, i32
  }
  func.func @transform_3(%arg0: i32) -> (i32, i32, i32) {
    %c0_i32 = arith.constant 0 : i32
    %c0_i32_0 = arith.constant 0 : i32
    %c0_i32_1 = arith.constant 0 : i32
    return %arg0, %c0_i32, %c0_i32_0 : i32, i32, i32
  }
}

</mosaic_0001>

<llo_original>
// kernel: hvsp_pallas.1
$region0: #{hvsp_pallas.1}
  #allocation0 [shape = 'u32[]', space=smem, size = 0x4, offset = 0x4, fixed_abs, tag = 'smem constant byte address 0x4 - core index']
  #allocation1 [shape = 'u32[144,128]{1,0:T(1,128)}', space=vmem, size = 0x12000, scoped, tag = 'internal scratch']
  #allocation2 [shape = 'f32[1,18,16]{2,1,0:T(8,128)}', space=vmem, size = 0x3000, scoped, tag = 'scratch operand']
  %s0 = inlined_call_operand.vmem [shape: f32[2,16,64], index: 0, kind: input, shape index: {}]
  %s1 = inlined_call_operand.vmem [shape: f32[64,16], index: 1, kind: input, shape index: {}]
  %s2 = inlined_call_operand.vmem [shape: f32[3,16,64], index: 2, kind: input, shape index: {}]
  %s3 = inlined_call_operand.vmem [shape: f32[2,16,64], index: 3, kind: output, shape index: {}]
  %s4 = sld [smem:[#allocation0]]
  $region45: #{hvsp_pallas.1} parent=0
    _
  %s6 = ssub.s32 1, %s4
  %s7 = scalar_select 0, %s6, %s4
  loop: start=0, step=1, limit=4
  $region2: #{hvsp_pallas.1} parent=0 // loop_pre_header
    _
  $region3: #{hvsp_pallas.1} parent=0 // loop_header
    %s9 = sphi 0, %s13
    %p10 = scmp.ge.s32.totalorder %s9, 4
    %s19 = sphi 0, %s21
    %s22 = sphi 0, %s19
    %s23 = sphi 0, %s22
    %s39 = sphi 0, %s23
    %s43 = sphi 0, %s43
    %s45 = sphi 0, %s43
    %s46 = sphi 0, %s45
    %s60 = sphi 0, %s46
    %s64 = sphi 0, %s64
    %s66 = sphi 0, %s64
    %s67 = sphi 0, %s66
    %s81 = sphi 0, %s67
    %s87 = sphi 0, %s89
    %s90 = sphi 0, %s87
    %s91 = sphi 0, %s90
    %s107 = sphi 0, %s91
  $region4: #{hvsp_pallas.1} parent=0 // loop_header_branch
    %12 = sbr.rel (%p10) target = $region8
  $region5: #{hvsp_pallas.1} parent=0 // loop_body
    %s14 = ssub.s32 %s9, 1
    %s15 = ssub.s32 %s9, 2
    %s16 = sadd.s32 %s9, 1
    %s17 = ssub.s32 %s9, %s16
    %p18 = scmp.eq.s32.totalorder %s17, 0
    %s20 = sadd.s32 %s19, 1
    %s21 = scalar_select %p18, %s19, %s20
    %p24 = pneg %p18
    %p25 = scmp.eq.s32.totalorder %s9, 1
    %p26 = por %p24, %p25
    %p27 = scmp.ne.s32.totalorder %s19, %s22
    %p28 = scmp.eq.s32.totalorder %s9, 0
    %p29 = por %p27, %p28
    %p30 = scmp.ne.s32.totalorder %s19, %s22
    %p31 = scmp.eq.s32.totalorder %s14, 1
    %p32 = por %p30, %p31
    %p33 = scmp.ne.s32.totalorder %s22, %s23
    %p34 = scmp.eq.s32.totalorder %s14, 0
    %p35 = por %p33, %p34
    %p36 = scmp.ne.s32.totalorder %s22, %s23
    %p37 = scmp.eq.s32.totalorder %s15, 1
    %p38 = por %p36, %p37
    %p40 = scmp.ne.s32.totalorder %s23, %s39
    %p41 = scmp.eq.s32.totalorder %s15, 0
    %p42 = por %p40, %p41
    %s44 = sadd.s32 %s43, 1
    %p47 = scmp.eq.s32.totalorder %s9, 1
    %p48 = scmp.ne.s32.totalorder %s43, %s45
    %p49 = scmp.eq.s32.totalorder %s9, 0
    %p50 = por %p48, %p49
    %p51 = scmp.ne.s32.totalorder %s43, %s45
    %p52 = scmp.eq.s32.totalorder %s14, 1
    %p53 = por %p51, %p52
    %p54 = scmp.ne.s32.totalorder %s45, %s46
    %p55 = scmp.eq.s32.totalorder %s14, 0
    %p56 = por %p54, %p55
    %p57 = scmp.ne.s32.totalorder %s45, %s46
    %p58 = scmp.eq.s32.totalorder %s15, 1
    %p59 = por %p57, %p58
    %p61 = scmp.ne.s32.totalorder %s46, %s60
    %p62 = scmp.eq.s32.totalorder %s15, 0
    %p63 = por %p61, %p62
    %s65 = sadd.s32 %s64, 1
    %p68 = scmp.eq.s32.totalorder %s9, 1
    %p69 = scmp.ne.s32.totalorder %s64, %s66
    %p70 = scmp.eq.s32.totalorder %s9, 0
    %p71 = por %p69, %p70
    %p72 = scmp.ne.s32.totalorder %s64, %s66
    %p73 = scmp.eq.s32.totalorder %s14, 1
    %p74 = por %p72, %p73
    %p75 = scmp.ne.s32.totalorder %s66, %s67
    %p76 = scmp.eq.s32.totalorder %s14, 0
    %p77 = por %p75, %p76
    %p78 = scmp.ne.s32.totalorder %s66, %s67
    %p79 = scmp.eq.s32.totalorder %s15, 1
    %p80 = por %p78, %p79
    %p82 = scmp.ne.s32.totalorder %s67, %s81
    %p83 = scmp.eq.s32.totalorder %s15, 0
    %p84 = por %p82, %p83
    %s85 = ssub.s32 %s9, %s16
    %p86 = scmp.eq.s32.totalorder %s85, 0
    %s88 = sadd.s32 %s87, 1
    %s89 = scalar_select %p86, %s87, %s88
    %p92 = pneg %p86
    %p93 = scmp.eq.s32.totalorder %s9, 1
    %p94 = por %p92, %p93
    %p95 = scmp.ne.s32.totalorder %s87, %s90
    %p96 = scmp.eq.s32.totalorder %s9, 0
    %p97 = por %p95, %p96
    %p98 = scmp.ne.s32.totalorder %s87, %s90
    %p99 = scmp.eq.s32.totalorder %s14, 1
    %p100 = por %p98, %p99
    %p101 = scmp.ne.s32.totalorder %s90, %s91
    %p102 = scmp.eq.s32.totalorder %s14, 0
    %p103 = por %p101, %p102
    %p104 = scmp.ne.s32.totalorder %s90, %s91
    %p105 = scmp.eq.s32.totalorder %s15, 1
    %p106 = por %p104, %p105
    %p108 = scmp.ne.s32.totalorder %s91, %s107
    %p109 = scmp.eq.s32.totalorder %s15, 0
    %p110 = por %p108, %p109
    %p111 = scmp.le.s32.totalorder 1, %s9
    %p112 = scmp.lt.s32.totalorder %s9, 3
    %p113 = pnand %p111, %p112
    %p114 = pneg %p113
    // Predicated region
    $region9: #{hvsp_pallas.1} parent=5 // pred_check
      _
    $region10: #{hvsp_pallas.1} parent=5 // pred_check_branch
      %116 = sbr.rel (%p113) target = $region12
    $region11: #{hvsp_pallas.1} parent=5 // pred_region
      %s117 = ssub.s32 %s9, 1
      // Predicated region
      $region13: #{hvsp_pallas.1} parent=11 // pred_check
        %p118 = pneg %p56
      $region14: #{hvsp_pallas.1} parent=11 // pred_check_branch
        %120 = sbr.rel (%p118) target = $region16
      $region15: #{hvsp_pallas.1} parent=11 // pred_region
        _
      $region16: #{hvsp_pallas.1} parent=11 // pred_fallthru
        _
      // Predicated region
      $region17: #{hvsp_pallas.1} parent=11 // pred_check
        %p121 = pneg %p77
      $region18: #{hvsp_pallas.1} parent=11 // pred_check_branch
        %123 = sbr.rel (%p121) target = $region20
      $region19: #{hvsp_pallas.1} parent=11 // pred_region
        _
      $region20: #{hvsp_pallas.1} parent=11 // pred_fallthru
        _
    $region12: #{hvsp_pallas.1} parent=5 // pred_fallthru
      _
    %p124 = scmp.lt.s32.totalorder %s9, 2
    // Predicated region
    $region21: #{hvsp_pallas.1} parent=5 // pred_check
      %p125 = pneg %p124
    $region22: #{hvsp_pallas.1} parent=5 // pred_check_branch
      %127 = sbr.rel (%p125) target = $region24
    $region23: #{hvsp_pallas.1} parent=5 // pred_region
      // Predicated region
      $region25: #{hvsp_pallas.1} parent=23 // pred_check
        %p128 = pneg %p29
      $region26: #{hvsp_pallas.1} parent=23 // pred_check_branch
        %130 = sbr.rel (%p128) target = $region28
      $region27: #{hvsp_pallas.1} parent=23 // pred_region
        %p131 = scmp.lt.s32.totalorder %s9, 1
        %s132 = scalar_select %p131, %s9, 1
        %s133 = smul.addr %s132, 2
        %s134 = smul.addr %s133, 8
        %s135 = scalar_lea.vmem %s0, %s134
      $region28: #{hvsp_pallas.1} parent=23 // pred_fallthru
        _
    $region24: #{hvsp_pallas.1} parent=5 // pred_fallthru
      _
    %p136 = scmp.le.s32.totalorder 1, %s9
    %p137 = scmp.lt.s32.totalorder %s9, 3
    %p138 = pnand %p136, %p137
    %p139 = pneg %p138
    // Predicated region
    $region29: #{hvsp_pallas.1} parent=5 // pred_check
      _
    $region30: #{hvsp_pallas.1} parent=5 // pred_check_branch
      %141 = sbr.rel (%p138) target = $region32
    $region31: #{hvsp_pallas.1} parent=5 // pred_region
      %s142 = ssub.s32 %s9, 1
      %p143 = scmp.lt.s32.totalorder %s14, 1
      %s144 = scalar_select %p143, %s14, 1
      %s145 = smul.addr %s144, 2
      %s146 = smul.addr %s145, 8
      %s147 = scalar_lea.vmem %s0, %s146
      %p148 = pneg %p35
      %p149 = pneg %p32
      %p150 = pneg %p56
      %p151 = pneg %p53
      %p152 = pneg %p77
      %p153 = pneg %p74
      %p154 = pneg %p103
      %p155 = pneg %p100
      %p156 = scmp.lt.s32.totalorder %s14, 1
      %s157 = scalar_select %p156, %s14, 1
      %s158 = smul.addr %s157, 2
      %s159 = smul.addr %s158, 8
      %s160 = scalar_lea.vmem %s3, %s159
      %p161 = scmp.lt.s32.totalorder %s14, 1
      %s162 = scalar_select %p161, %s14, 1
      %s163 = smul.addr %s162, 2
      %s164 = smul.addr %s163, 8
      %s165 = scalar_lea.vmem %s0, %s164
      %p166 = scmp.lt.s32.totalorder %s14, 1
      %s167 = scalar_select %p166, %s14, 1
      %s168 = smul.addr %s167, 2
      %s169 = smul.addr %s168, 8
      %s170 = scalar_lea.vmem %s3, %s169
      %vm171 = vcmask 122880
      %172 = vst.msk [vmem:[#allocation2] sm:$0x1] %vm171, 0.0
      %173 = vst.msk [vmem:[#allocation2 + $0x11] sm:$0x1] %vm171, 0.0
      %v174 = vld [vmem:[%s165] sm:$0xff]
      %v175 = vld [vmem:[%s165 + $0x8] sm:$0xff]
      %v176 = vld [vmem:[%s1] sm:$0xff]
      %v177 = vld [vmem:[%s1 + $0x8] sm:$0xff]
      %v178 = vld [vmem:[%s1 + $0x10] sm:$0xff]
      %v179 = vld [vmem:[%s1 + $0x18] sm:$0xff]
      %v180 = vld [vmem:[%s1 + $0x20] sm:$0xff]
      %v181 = vld [vmem:[%s1 + $0x28] sm:$0xff]
      %v182 = vld [vmem:[%s1 + $0x30] sm:$0xff]
      %v183 = vld [vmem:[%s1 + $0x38] sm:$0xff]
      %vm184 = vcmask 523264
      %v186 = vsel %vm184, %v174, 0
      %v189 = vsel %vm184, %v175, 0
      %191 = vmatprep.subr.mxu0 0.0
      %192 = vmatpush1.msra.mxu0 %v176
      %193 = vmatprep.subr.mxu0 0.0
      %194 = vmatpush1.msra.mxu0 %v177
      %195 = vmatprep.subr.mxu0 0.0
      %196 = vmatpush1.msra.mxu0 %v178
      %197 = vmatprep.subr.mxu0 0.0
      %198 = vmatpush1.msra.mxu0 %v179
      %199 = vmatprep.subr.mxu0 0.0
      %200 = vmatpush1.msra.mxu0 %v180
      %201 = vmatprep.subr.mxu0 0.0
      %202 = vmatpush1.msra.mxu0 %v181
      %203 = vmatprep.subr.mxu0 0.0
      %204 = vmatpush1.msra.mxu0 %v182
      %205 = vmatprep.subr.mxu0 0.0
      %206 = vmatpush1.msra.mxu0 %v183
      %207 = vmatprep.subr.mxu0 0.0
      %208 = vmatpush1.msra.mxu0 0.0
      %209 = vmatprep.subr.mxu0 0.0
      %210 = vmatpush1.msra.mxu0 0.0
      %211 = vmatprep.subr.mxu0 0.0
      %212 = vmatpush1.msra.mxu0 0.0
      %213 = vmatprep.subr.mxu0 0.0
      %214 = vmatpush1.msra.mxu0 0.0
      %215 = vmatprep.subr.mxu0 0.0
      %216 = vmatpush1.msra.mxu0 0.0
      %217 = vmatprep.subr.mxu0 0.0
      %218 = vmatpush1.msra.mxu0 0.0
      %219 = vmatprep.subr.mxu0 0.0
      %220 = vmatpush1.msra.mxu0 0.0
      %221 = vmatprep.subr.mxu0 0.0
      %222 = vmatpush1.msra.mxu0 0.0
      %223 = vmatprep.subr.mxu0 0.0
      %224 = vmatpush1.msra.mxu0 0.0
      %225 = vmatprep.subr.mxu0 0.0
      %226 = vmatpush1.msra.mxu0 0.0
      %227 = vmatprep.subr.mxu0 0.0
      %228 = vmatpush1.msra.mxu0 0.0
      %229 = vmatprep.subr.mxu0 0.0
      %230 = vmatpush1.msra.mxu0 0.0
      %231 = vmatprep.subr.mxu0 0.0
      %232 = vmatpush1.msra.mxu0 0.0
      %233 = vmatprep.subr.mxu0 0.0
      %234 = vmatpush1.msra.mxu0 0.0
      %235 = vmatprep.subr.mxu0 0.0
      %236 = vmatpush1.msra.mxu0 0.0
      %237 = vmatprep.subr.mxu0 0.0
      %238 = vmatpush1.msra.mxu0 0.0
      %239 = vmatprep.subr.mxu0 0.0
      %240 = vmatpush1.msra.mxu0 0.0
      %241 = vmatprep.subr.mxu0 0.0
      %242 = vmatpush1.msra.mxu0 0.0
      %243 = vmatprep.subr.mxu0 0.0
      %244 = vmatpush1.msra.mxu0 0.0
      %245 = vmatprep.subr.mxu0 0.0
      %246 = vmatpush1.msra.mxu0 0.0
      %247 = vmatprep.subr.mxu0 0.0
      %248 = vmatpush1.msra.mxu0 0.0
      %249 = vmatprep.subr.mxu0 0.0
      %250 = vmatpush1.msra.mxu0 0.0
      %251 = vmatprep.subr.mxu0 0.0
      %252 = vmatpush1.msra.mxu0 0.0
      %253 = vmatprep.subr.mxu0 0.0
      %254 = vmatpush1.msra.mxu0 0.0
      %255 = vmatprep.mubr.f32.mxu0 0.0
      %256 = vmatmul.mubr.f32.gmra.mrb[0].mxu0 %v186
      %v257 = vpop.f32.mrb[0].mxu0
      %v258 = vadd.f32 0.0, %v257
      %v259 = vpop.f32.mrb[0].mxu0
      %260 = vmatprep.mubr.f32.mxu0 0.0
      %261 = vmatmul.mubr.f32.gmra.mrb[0].mxu0 %v189
      %v262 = vpop.f32.mrb[0].mxu0
      %v263 = vadd.f32 0.0, %v262
      %v264 = vpop.f32.mrb[0].mxu0
      %265 = vdwg.mxu0
      %vm266 = vcmask 130048
      %267 = vst.msk [vmem:[#allocation2 + $0x1] sm:$0xff] %vm266, %v258
      %268 = vst.msk [vmem:[#allocation2 + $0x9] sm:$0xff] %vm266, %v263
      %v269 = vld [vmem:[#allocation2] sm:$0xff]
      %v270 = vld [vmem:[#allocation2 + $0x8] sm:$0xff]
      %v271 = vld [vmem:[%s2] sm:$0xff]
      %v272 = vld [vmem:[%s2 + $0x8] sm:$0xff]
      %v273 = vld [vmem:[#allocation2 + $0x1] sm:$0xff]
      %v274 = vld [vmem:[#allocation2 + $0x9] sm:$0xff]
      %s275 = scalar_lea.vmem %s2, 16
      %v276 = vld [vmem:[%s275] sm:$0xff]
      %v277 = vld [vmem:[%s275 + $0x8] sm:$0xff]
      %v279 = vsel %vm266, %v273, 0
      %v282 = vsel %vm266, %v274, 0
      %284 = vmatprep.subr.mxu0 0.0
      %285 = vmatpush1.msra.mxu0 %v276
      %286 = vmatprep.subr.mxu0 0.0
      %287 = vmatpush1.msra.mxu0 %v277
      %288 = vmatprep.subr.mxu0 0.0
      %289 = vmatpush1.msra.mxu0 0.0
      %290 = vmatprep.subr.mxu0 0.0
      %291 = vmatpush1.msra.mxu0 0.0
      %292 = vmatprep.subr.mxu0 0.0
      %293 = vmatpush1.msra.mxu0 0.0
      %294 = vmatprep.subr.mxu0 0.0
      %295 = vmatpush1.msra.mxu0 0.0
      %296 = vmatprep.subr.mxu0 0.0
      %297 = vmatpush1.msra.mxu0 0.0
      %298 = vmatprep.subr.mxu0 0.0
      %299 = vmatpush1.msra.mxu0 0.0
      %300 = vmatprep.subr.mxu0 0.0
      %301 = vmatpush1.msra.mxu0 0.0
      %302 = vmatprep.subr.mxu0 0.0
      %303 = vmatpush1.msra.mxu0 0.0
      %304 = vmatprep.subr.mxu0 0.0
      %305 = vmatpush1.msra.mxu0 0.0
      %306 = vmatprep.subr.mxu0 0.0
      %307 = vmatpush1.msra.mxu0 0.0
      %308 = vmatprep.subr.mxu0 0.0
      %309 = vmatpush1.msra.mxu0 0.0
      %310 = vmatprep.subr.mxu0 0.0
      %311 = vmatpush1.msra.mxu0 0.0
      %312 = vmatprep.subr.mxu0 0.0
      %313 = vmatpush1.msra.mxu0 0.0
      %314 = vmatprep.subr.mxu0 0.0
      %315 = vmatpush1.msra.mxu0 0.0
      %316 = vmatprep.subr.mxu0 0.0
      %317 = vmatpush1.msra.mxu0 0.0
      %318 = vmatprep.subr.mxu0 0.0
      %319 = vmatpush1.msra.mxu0 0.0
      %320 = vmatprep.subr.mxu0 0.0
      %321 = vmatpush1.msra.mxu0 0.0
      %322 = vmatprep.subr.mxu0 0.0
      %323 = vmatpush1.msra.mxu0 0.0
      %324 = vmatprep.subr.mxu0 0.0
      %325 = vmatpush1.msra.mxu0 0.0
      %326 = vmatprep.subr.mxu0 0.0
      %327 = vmatpush1.msra.mxu0 0.0
      %328 = vmatprep.subr.mxu0 0.0
      %329 = vmatpush1.msra.mxu0 0.0
      %330 = vmatprep.subr.mxu0 0.0
      %331 = vmatpush1.msra.mxu0 0.0
      %332 = vmatprep.subr.mxu0 0.0
      %333 = vmatpush1.msra.mxu0 0.0
      %334 = vmatprep.subr.mxu0 0.0
      %335 = vmatpush1.msra.mxu0 0.0
      %336 = vmatprep.subr.mxu0 0.0
      %337 = vmatpush1.msra.mxu0 0.0
      %338 = vmatprep.subr.mxu0 0.0
      %339 = vmatpush1.msra.mxu0 0.0
      %340 = vmatprep.subr.mxu0 0.0
      %341 = vmatpush1.msra.mxu0 0.0
      %342 = vmatprep.subr.mxu0 0.0
      %343 = vmatpush1.msra.mxu0 0.0
      %344 = vmatprep.subr.mxu0 0.0
      %345 = vmatpush1.msra.mxu0 0.0
      %346 = vmatprep.subr.mxu0 0.0
      %347 = vmatpush1.msra.mxu0 0.0
      %348 = vmatprep.mubr.f32.mxu0 0.0
      %349 = vmatmul.mubr.f32.gmra.mrb[0].mxu0 %v279
      %v350 = vpop.f32.mrb[0].mxu0
      %v351 = vadd.f32 0.0, %v350
      %v352 = vpop.f32.mrb[0].mxu0
      %353 = vmatprep.mubr.f32.mxu0 0.0
      %354 = vmatmul.mubr.f32.gmra.mrb[0].mxu0 %v282
      %v355 = vpop.f32.mrb[0].mxu0
      %v356 = vadd.f32 0.0, %v355
      %v357 = vpop.f32.mrb[0].mxu0
      %358 = vdwg.mxu0
      %v360 = vsel %vm266, %v269, 0
      %v363 = vsel %vm266, %v270, 0
      %365 = vmatprep.subr.mxu0 0.0
      %366 = vmatpush1.msra.mxu0 %v271
      %367 = vmatprep.subr.mxu0 0.0
      %368 = vmatpush1.msra.mxu0 %v272
      %369 = vmatprep.subr.mxu0 0.0
      %370 = vmatpush1.msra.mxu0 0.0
      %371 = vmatprep.subr.mxu0 0.0
      %372 = vmatpush1.msra.mxu0 0.0
      %373 = vmatprep.subr.mxu0 0.0
      %374 = vmatpush1.msra.mxu0 0.0
      %375 = vmatprep.subr.mxu0 0.0
      %376 = vmatpush1.msra.mxu0 0.0
      %377 = vmatprep.subr.mxu0 0.0
      %378 = vmatpush1.msra.mxu0 0.0
      %379 = vmatprep.subr.mxu0 0.0
      %380 = vmatpush1.msra.mxu0 0.0
      %381 = vmatprep.subr.mxu0 0.0
      %382 = vmatpush1.msra.mxu0 0.0
      %383 = vmatprep.subr.mxu0 0.0
      %384 = vmatpush1.msra.mxu0 0.0
      %385 = vmatprep.subr.mxu0 0.0
      %386 = vmatpush1.msra.mxu0 0.0
      %387 = vmatprep.subr.mxu0 0.0
      %388 = vmatpush1.msra.mxu0 0.0
      %389 = vmatprep.subr.mxu0 0.0
      %390 = vmatpush1.msra.mxu0 0.0
      %391 = vmatprep.subr.mxu0 0.0
      %392 = vmatpush1.msra.mxu0 0.0
      %393 = vmatprep.subr.mxu0 0.0
      %394 = vmatpush1.msra.mxu0 0.0
      %395 = vmatprep.subr.mxu0 0.0
      %396 = vmatpush1.msra.mxu0 0.0
      %397 = vmatprep.subr.mxu0 0.0
      %398 = vmatpush1.msra.mxu0 0.0
      %399 = vmatprep.subr.mxu0 0.0
      %400 = vmatpush1.msra.mxu0 0.0
      %401 = vmatprep.subr.mxu0 0.0
      %402 = vmatpush1.msra.mxu0 0.0
      %403 = vmatprep.subr.mxu0 0.0
      %404 = vmatpush1.msra.mxu0 0.0
      %405 = vmatprep.subr.mxu0 0.0
      %406 = vmatpush1.msra.mxu0 0.0
      %407 = vmatprep.subr.mxu0 0.0
      %408 = vmatpush1.msra.mxu0 0.0
      %409 = vmatprep.subr.mxu0 0.0
      %410 = vmatpush1.msra.mxu0 0.0
      %411 = vmatprep.subr.mxu0 0.0
      %412 = vmatpush1.msra.mxu0 0.0
      %413 = vmatprep.subr.mxu0 0.0
      %414 = vmatpush1.msra.mxu0 0.0
      %415 = vmatprep.subr.mxu0 0.0
      %416 = vmatpush1.msra.mxu0 0.0
      %417 = vmatprep.subr.mxu0 0.0
      %418 = vmatpush1.msra.mxu0 0.0
      %419 = vmatprep.subr.mxu0 0.0
      %420 = vmatpush1.msra.mxu0 0.0
      %421 = vmatprep.subr.mxu0 0.0
      %422 = vmatpush1.msra.mxu0 0.0
      %423 = vmatprep.subr.mxu0 0.0
      %424 = vmatpush1.msra.mxu0 0.0
      %425 = vmatprep.subr.mxu0 0.0
      %426 = vmatpush1.msra.mxu0 0.0
      %427 = vmatprep.subr.mxu0 0.0
      %428 = vmatpush1.msra.mxu0 0.0
      %429 = vmatprep.mubr.f32.mxu0 0.0
      %430 = vmatmul.mubr.f32.gmra.mrb[0].mxu0 %v360
      %v431 = vpop.f32.mrb[0].mxu0
      %v432 = vadd.f32 %v351, %v431
      %v433 = vpop.f32.mrb[0].mxu0
      %434 = vmatprep.mubr.f32.mxu0 0.0
      %435 = vmatmul.mubr.f32.gmra.mrb[0].mxu0 %v363
      %v436 = vpop.f32.mrb[0].mxu0
      %v437 = vadd.f32 %v356, %v436
      %v438 = vpop.f32.mrb[0].mxu0
      %439 = vdwg.mxu0
      %v440 = vld [vmem:[#allocation2 + $0x2] sm:$0xff]
      %v441 = vld [vmem:[#allocation2 + $0xa] sm:$0xff]
      %s442 = scalar_lea.vmem %s2, 32
      %v443 = vld [vmem:[%s442] sm:$0xff]
      %v444 = vld [vmem:[%s442 + $0x8] sm:$0xff]
      %v446 = vsel %vm266, %v440, 0
      %v449 = vsel %vm266, %v441, 0
      %451 = vmatprep.subr.mxu0 0.0
      %452 = vmatpush1.msra.mxu0 %v443
      %453 = vmatprep.subr.mxu0 0.0
      %454 = vmatpush1.msra.mxu0 %v444
      %455 = vmatprep.subr.mxu0 0.0
      %456 = vmatpush1.msra.mxu0 0.0
      %457 = vmatprep.subr.mxu0 0.0
      %458 = vmatpush1.msra.mxu0 0.0
      %459 = vmatprep.subr.mxu0 0.0
      %460 = vmatpush1.msra.mxu0 0.0
      %461 = vmatprep.subr.mxu0 0.0
      %462 = vmatpush1.msra.mxu0 0.0
      %463 = vmatprep.subr.mxu0 0.0
      %464 = vmatpush1.msra.mxu0 0.0
      %465 = vmatprep.subr.mxu0 0.0
      %466 = vmatpush1.msra.mxu0 0.0
      %467 = vmatprep.subr.mxu0 0.0
      %468 = vmatpush1.msra.mxu0 0.0
      %469 = vmatprep.subr.mxu0 0.0
      %470 = vmatpush1.msra.mxu0 0.0
      %471 = vmatprep.subr.mxu0 0.0
      %472 = vmatpush1.msra.mxu0 0.0
      %473 = vmatprep.subr.mxu0 0.0
      %474 = vmatpush1.msra.mxu0 0.0
      %475 = vmatprep.subr.mxu0 0.0
      %476 = vmatpush1.msra.mxu0 0.0
      %477 = vmatprep.subr.mxu0 0.0
      %478 = vmatpush1.msra.mxu0 0.0
      %479 = vmatprep.subr.mxu0 0.0
      %480 = vmatpush1.msra.mxu0 0.0
      %481 = vmatprep.subr.mxu0 0.0
      %482 = vmatpush1.msra.mxu0 0.0
      %483 = vmatprep.subr.mxu0 0.0
      %484 = vmatpush1.msra.mxu0 0.0
      %485 = vmatprep.subr.mxu0 0.0
      %486 = vmatpush1.msra.mxu0 0.0
      %487 = vmatprep.subr.mxu0 0.0
      %488 = vmatpush1.msra.mxu0 0.0
      %489 = vmatprep.subr.mxu0 0.0
      %490 = vmatpush1.msra.mxu0 0.0
      %491 = vmatprep.subr.mxu0 0.0
      %492 = vmatpush1.msra.mxu0 0.0
      %493 = vmatprep.subr.mxu0 0.0
      %494 = vmatpush1.msra.mxu0 0.0
      %495 = vmatprep.subr.mxu0 0.0
      %496 = vmatpush1.msra.mxu0 0.0
      %497 = vmatprep.subr.mxu0 0.0
      %498 = vmatpush1.msra.mxu0 0.0
      %499 = vmatprep.subr.mxu0 0.0
      %500 = vmatpush1.msra.mxu0 0.0
      %501 = vmatprep.subr.mxu0 0.0
      %502 = vmatpush1.msra.mxu0 0.0
      %503 = vmatprep.subr.mxu0 0.0
      %504 = vmatpush1.msra.mxu0 0.0
      %505 = vmatprep.subr.mxu0 0.0
      %506 = vmatpush1.msra.mxu0 0.0
      %507 = vmatprep.subr.mxu0 0.0
      %508 = vmatpush1.msra.mxu0 0.0
      %509 = vmatprep.subr.mxu0 0.0
      %510 = vmatpush1.msra.mxu0 0.0
      %511 = vmatprep.subr.mxu0 0.0
      %512 = vmatpush1.msra.mxu0 0.0
      %513 = vmatprep.subr.mxu0 0.0
      %514 = vmatpush1.msra.mxu0 0.0
      %515 = vmatprep.mubr.f32.mxu0 0.0
      %516 = vmatmul.mubr.f32.gmra.mrb[0].mxu0 %v446
      %v517 = vpop.f32.mrb[0].mxu0
      %v518 = vadd.f32 0.0, %v517
      %v519 = vpop.f32.mrb[0].mxu0
      %520 = vmatprep.mubr.f32.mxu0 0.0
      %521 = vmatmul.mubr.f32.gmra.mrb[0].mxu0 %v449
      %v522 = vpop.f32.mrb[0].mxu0
      %v523 = vadd.f32 0.0, %v522
      %v524 = vpop.f32.mrb[0].mxu0
      %525 = vdwg.mxu0
      %v526 = vadd.f32 %v432, %v518
      %v527 = vadd.f32 %v437, %v523
      %528 = vst.msk [vmem:[%s170] sm:$0xff] %vm184, %v526
      %529 = vst.msk [vmem:[%s170 + $0x8] sm:$0xff] %vm184, %v527
      %p530 = scmp.lt.s32.totalorder %s14, 1
      %s531 = scalar_select %p530, %s14, 1
      %s532 = smul.addr %s531, 2
      %s533 = smul.addr %s532, 8
      %s534 = scalar_lea.vmem %s3, %s533
      // Predicated region
      $region33: #{hvsp_pallas.1} parent=31 // pred_check
        %p535 = pneg %p100
      $region34: #{hvsp_pallas.1} parent=31 // pred_check_branch
        %537 = sbr.rel (%p535) target = $region36
      $region35: #{hvsp_pallas.1} parent=31 // pred_region
        _
      $region36: #{hvsp_pallas.1} parent=31 // pred_fallthru
        _
    $region32: #{hvsp_pallas.1} parent=5 // pred_fallthru
      _
    %p538 = scmp.le.s32.totalorder 2, %s9
    // Predicated region
    $region37: #{hvsp_pallas.1} parent=5 // pred_check
      %p539 = pneg %p538
    $region38: #{hvsp_pallas.1} parent=5 // pred_check_branch
      %541 = sbr.rel (%p539) target = $region40
    $region39: #{hvsp_pallas.1} parent=5 // pred_region
      %s542 = ssub.s32 %s9, 2
      // Predicated region
      $region41: #{hvsp_pallas.1} parent=39 // pred_check
        %p543 = pneg %p106
      $region42: #{hvsp_pallas.1} parent=39 // pred_check_branch
        %545 = sbr.rel (%p543) target = $region44
      $region43: #{hvsp_pallas.1} parent=39 // pred_region
        %p546 = scmp.lt.s32.totalorder %s15, 1
        %s547 = scalar_select %p546, %s15, 1
        %s548 = smul.addr %s547, 2
        %s549 = smul.addr %s548, 8
        %s550 = scalar_lea.vmem %s3, %s549
      $region44: #{hvsp_pallas.1} parent=39 // pred_fallthru
        _
    $region40: #{hvsp_pallas.1} parent=5 // pred_fallthru
      _
  $region6: #{hvsp_pallas.1} parent=0 // loop_footer
    %s13 = sadd.s32 1, %s9
  $region7: #{hvsp_pallas.1} parent=0 // loop_footer_branch
    %8 = sbr.rel target = $region3
  $region8: #{hvsp_pallas.1} parent=0 // loop_exit
    _

</llo_original>
